<compile_context>
chip_gen: v7x
topology: tpu7x:2x2x1
jax: 0.10.0
libtpu: 0.0.40
codegen_flags: <defaults>
</compile_context>

<pallas_src>
import functools

import numpy as np
import jax
import jax.numpy as jnp
from jax.experimental import pallas as pl
from jax.experimental.pallas import tpu as pltpu


def _round_up(x, m):
    return ((x + m - 1) // m) * m


def _rse_kernel(patches_ref, pm_ref, wconv_ref, w1_ref, b1_ref, w2_ref, b2_ref,
                out_ref, *, shortcut):
    # patches_ref: (1, KKC, HW_TILE) bf16 im2col tile, flat spatial on the lane axis
    # pm_ref     : (1, KKC, 1)       f32 per-image patch mean over the TRUE HW extent
    # wconv_ref  : (Cout, KKC)       bf16 conv weight, taps flattened (kh, kw, cin)
    # w1_ref     : (Cmid, Cout), b1_ref: (Cmid, 1)   SE 1x1 conv #1 (f32)
    # w2_ref     : (Cout, Cmid), b2_ref: (Cout, 1)   SE 1x1 conv #2 (f32)
    # out_ref    : (1, Cout, HW_TILE) lane-dense output tile
    wc = wconv_ref[...]                                            # (Cout, KKC) bf16

    # k x k conv on this lane tile == a single bf16 MXU matmul, f32 accumulate.
    y = jnp.dot(wc, patches_ref[0],
                preferred_element_type=jnp.float32)                # (Cout, HW_TILE) f32

    # SE gate from the precomputed patch mean: Wconv @ mean(patches) == mean_HW(y),
    # so no cross-tile reduction is needed.  All SE / gate math in f32.
    pooled = jnp.dot(wc.astype(jnp.float32), pm_ref[0],
                     preferred_element_type=jnp.float32)           # (Cout, 1)
    s = jnp.maximum(
        jnp.dot(w1_ref[...], pooled, preferred_element_type=jnp.float32) + b1_ref[...],
        0.0)                                                       # (Cmid, 1)
    z = jnp.dot(w2_ref[...], s, preferred_element_type=jnp.float32) + b2_ref[...]
    scale = jnp.clip((z + 3.0) * (1.0 / 6.0), 0.0, 1.0)            # hardsigmoid
    gain = (scale + 1.0) if shortcut else scale                    # y + y*scale = y*(1+scale)

    out_ref[0] = (y * gain).astype(out_ref.dtype)                  # single lane-dense store


def rse_layer(x, conv_w, w1, b1, w2, b2, *, shortcut=True, hw_tile=2048,
              compute_dtype=jnp.bfloat16):
    """RSELayer forward.

    x      : (N, Cin, H, W)        NCHW (PyTorch layout)
    conv_w : (Cout, Cin, KH, KW)   OIHW (PyTorch layout), bias-free
    w1     : (Cmid, Cout), b1: (Cmid,)   SE conv1 (1x1)
    w2     : (Cout, Cmid), b2: (Cout,)   SE conv2 (1x1)
    hw_tile: lane-axis tile width (multiple of 128); sweep 1024-8192, smaller on v7x.
    returns: (N, Cout, Hout, Wout) NCHW, dtype of x
    """
    N, Cin, H, W = x.shape
    Cout, _, KH, KW = conv_w.shape
    Cmid = w1.shape[0]
    ph, pw = KH // 2, KW // 2
    Hout = H + 2 * ph - KH + 1
    Wout = W + 2 * pw - KW + 1
    HW = Hout * Wout
    KKC = KH * KW * Cin

    # --- im2col in the wrapper (XLA fuses the pad): (N, KKC, HW), lane-dense spatial.
    xp = jnp.pad(x, ((0, 0), (0, 0), (ph, ph), (pw, pw)))
    taps = [xp[:, :, kh:kh + Hout, kw:kw + Wout]
            for kh in range(KH) for kw in range(KW)]               # each (N, Cin, Hout, Wout)
    patches = jnp.stack(taps, axis=1).reshape(N, KKC, HW)

    # Per-image patch mean over the TRUE spatial extent (before any lane padding).
    # mean_HW(conv(x)) == Wconv_flat @ mean_HW(patches)  -> gate needs no second pass.
    pm = jnp.mean(patches.astype(jnp.float32), axis=-1, keepdims=True)   # (N, KKC, 1) f32

    # --- lane tiling: pad HW to a multiple of hw_tile (itself a multiple of 128).
    hw_tile = min(_round_up(hw_tile, 128), _round_up(HW, 128))
    HW_pad = _round_up(HW, hw_tile)
    if HW_pad != HW:
        patches = jnp.pad(patches, ((0, 0), (0, 0), (0, HW_pad - HW)))
    n_hw = HW_pad // hw_tile

    # --- operand dtypes: bf16 for the streamed conv operands, f32 for the SE path.
    patches = patches.astype(compute_dtype)
    wc = jnp.transpose(conv_w, (0, 2, 3, 1)).reshape(Cout, KKC).astype(compute_dtype)
    w1c = w1.astype(jnp.float32)
    b1c = b1.reshape(Cmid, 1).astype(jnp.float32)
    w2c = w2.astype(jnp.float32)
    b2c = b2.reshape(Cout, 1).astype(jnp.float32)

    # --- VMEM budget: 2 buffers x (patch tile + out tile) + resident weights + headroom,
    # capped at 64 MiB so the default is safe on v7x (shrink hw_tile there if needed).
    in_bytes = jnp.dtype(compute_dtype).itemsize
    out_bytes = jnp.dtype(x.dtype).itemsize
    tile_bytes = KKC * hw_tile * in_bytes + Cout * hw_tile * out_bytes
    const_bytes = (KKC * 4 + Cout * KKC * in_bytes
                   + Cmid * Cout * 4 + Cmid * 4 + Cout * Cmid * 4 + Cout * 4)
    vmem_limit = min(2 * tile_bytes + 2 * const_bytes + (2 << 20), 64 * 1024 * 1024)

    kernel = functools.partial(_rse_kernel, shortcut=shortcut)

    out = pl.pallas_call(
        kernel,
        out_shape=jax.ShapeDtypeStruct((N, Cout, HW_pad), x.dtype),
        grid_spec=pltpu.PrefetchScalarGridSpec(
            num_scalar_prefetch=0,
            grid=(N, n_hw),                         # both axes independent -> megacore-friendly
            in_specs=[
                pl.BlockSpec((1, KKC, hw_tile), lambda n, t: (n, 0, t)),
                pl.BlockSpec((1, KKC, 1), lambda n, t: (n, 0, 0)),
                # Constant index maps -> weight blocks stay resident across steps.
                pl.BlockSpec((Cout, KKC), lambda n, t: (0, 0)),
                pl.BlockSpec((Cmid, Cout), lambda n, t: (0, 0)),
                pl.BlockSpec((Cmid, 1), lambda n, t: (0, 0)),
                pl.BlockSpec((Cout, Cmid), lambda n, t: (0, 0)),
                pl.BlockSpec((Cout, 1), lambda n, t: (0, 0)),
            ],
            out_specs=pl.BlockSpec((1, Cout, hw_tile), lambda n, t: (n, 0, t)),
        ),
        compiler_params=pltpu.CompilerParams(
            dimension_semantics=("parallel", "parallel"),
            vmem_limit_bytes=int(vmem_limit),
        ),
    )(patches, pm, wc, w1c, b1c, w2c, b2c)

    # Drop lane padding, then split the flat spatial dim (free row-major reshape) -> NCHW.
    return out[:, :, :HW].reshape(N, Cout, Hout, Wout)


def rse_reference(x, conv_w, w1, b1, w2, b2, *, shortcut=True):
    """Pure-JAX f32 reference mirroring the PyTorch module semantics (NCHW / OIHW)."""
    KH, KW = conv_w.shape[2], conv_w.shape[3]
    ph, pw = KH // 2, KW // 2
    y = jax.lax.conv_general_dilated(
        x, conv_w, window_strides=(1, 1), padding=((ph, ph), (pw, pw)),
        dimension_numbers=("NCHW", "OIHW", "NCHW"))
    pooled = jnp.mean(y, axis=(2, 3), keepdims=True)                    # (N, Cout, 1, 1)
    s = jax.nn.relu(jnp.einsum("mc,ncij->nmij", w1, pooled) + b1[None, :, None, None])
    z = jnp.einsum("cm,nmij->ncij", w2, s) + b2[None, :, None, None]
    scale = jnp.clip((z + 3.0) / 6.0, 0.0, 1.0)
    return y + y * scale if shortcut else y * scale


if __name__ == "__main__":
    # RSELayer(in_channels=4, out_channels=8, kernel_size=3, shortcut=True)
    N, Cin, H, W = 2, 4, 16, 16
    Cout, K = 8, 3
    reduction = 4
    Cmid = Cout // reduction

    key = jax.random.PRNGKey(0)
    k0, k1, k2, k3, k4, k5 = jax.random.split(key, 6)

    x = jax.random.normal(k0, (N, Cin, H, W), dtype=jnp.float32)
    conv_w = 0.1 * jax.random.normal(k1, (Cout, Cin, K, K), dtype=jnp.float32)   # OIHW
    w1 = 0.1 * jax.random.normal(k2, (Cmid, Cout), dtype=jnp.float32)            # SE conv1
    b1 = 0.1 * jax.random.normal(k3, (Cmid,), dtype=jnp.float32)
    w2 = 0.1 * jax.random.normal(k4, (Cout, Cmid), dtype=jnp.float32)            # SE conv2
    b2 = 0.1 * jax.random.normal(k5, (Cout,), dtype=jnp.float32)

    out = rse_layer(x, conv_w, w1, b1, w2, b2, shortcut=True)
    out = jax.block_until_ready(out)

    ref = rse_reference(x, conv_w, w1, b1, w2, b2, shortcut=True)

    assert out.shape == (N, Cout, H, W), out.shape
    # bf16 streaming operands with f32 accumulation -> loosened tolerance vs f32 ref.
    np.testing.assert_allclose(np.asarray(out, dtype=np.float32), np.asarray(ref),
                               rtol=2e-2, atol=5e-2)
    print("KERNEL_OK")
</pallas_src>

<mosaic_0001>
module attributes {stable_mosaic.version = 11 : i64} {
  func.func @_rse_kernel(%arg0: i32, %arg1: i32, %arg2: memref<1x36x256xbf16, #tpu.memory_space<vmem>>, %arg3: memref<1x36x1xf32, #tpu.memory_space<vmem>>, %arg4: memref<8x36xbf16, #tpu.memory_space<vmem>>, %arg5: memref<2x8xf32, #tpu.memory_space<vmem>>, %arg6: memref<2x1xf32, #tpu.memory_space<vmem>>, %arg7: memref<8x2xf32, #tpu.memory_space<vmem>>, %arg8: memref<8x1xf32, #tpu.memory_space<vmem>>, %arg9: memref<1x8x256xf32, #tpu.memory_space<vmem>>) attributes {dimension_semantics = [#tpu.dimension_semantics<parallel>, #tpu.dimension_semantics<parallel>], iteration_bounds = array<i64: 2, 1>, scalar_prefetch = 0 : i64, scratch_operands = 0 : i64, tpu.core_type = #tpu.core_type<tc>, window_params = [{transform_indices = @transform_0, window_bounds = array<i64: 1, 36, 256>}, {transform_indices = @transform_1, window_bounds = array<i64: 1, 36, 1>}, {pipeline_mode = #tpu.pipeline_mode<synchronous>, transform_indices = @transform_2, window_bounds = array<i64: 8, 36>}, {pipeline_mode = #tpu.pipeline_mode<synchronous>, transform_indices = @transform_3, window_bounds = array<i64: 2, 8>}, {pipeline_mode = #tpu.pipeline_mode<synchronous>, transform_indices = @transform_4, window_bounds = array<i64: 2, 1>}, {pipeline_mode = #tpu.pipeline_mode<synchronous>, transform_indices = @transform_5, window_bounds = array<i64: 8, 2>}, {pipeline_mode = #tpu.pipeline_mode<synchronous>, transform_indices = @transform_6, window_bounds = array<i64: 8, 1>}, {transform_indices = @transform_7, window_bounds = array<i64: 1, 8, 256>}]} {
    %c0 = arith.constant 0 : index
    %c0_0 = arith.constant 0 : index
    %0 = vector.load %arg4[%c0, %c0_0] : memref<8x36xbf16, #tpu.memory_space<vmem>>, vector<8x36xbf16>
    %c0_1 = arith.constant 0 : index
    %c0_2 = arith.constant 0 : index
    %c0_3 = arith.constant 0 : index
    %1 = vector.load %arg2[%c0_1, %c0_2, %c0_3] : memref<1x36x256xbf16, #tpu.memory_space<vmem>>, vector<1x36x256xbf16>
    %2 = vector.shape_cast %1 : vector<1x36x256xbf16> to vector<36x256xbf16>
    %cst = arith.constant dense<0.000000e+00> : vector<8x256xf32>
    %3 = tpu.matmul %0, %2, %cst {dimension_numbers = #tpu.dot_dimension_numbers<[1], [0], [0], [1], [0, 0, 1, 1], [], []>} : vector<8x36xbf16>, vector<36x256xbf16>, vector<8x256xf32> -> vector<8x256xf32>
    %4 = arith.extf %0 : vector<8x36xbf16> to vector<8x36xf32>
    %c0_4 = arith.constant 0 : index
    %c0_5 = arith.constant 0 : index
    %c0_6 = arith.constant 0 : index
    %5 = vector.load %arg3[%c0_4, %c0_5, %c0_6] : memref<1x36x1xf32, #tpu.memory_space<vmem>>, vector<1x36x1xf32>
    %6 = vector.shape_cast %5 : vector<1x36x1xf32> to vector<36x1xf32>
    %cst_7 = arith.constant dense<0.000000e+00> : vector<8x1xf32>
    %7 = tpu.matmul %4, %6, %cst_7 {dimension_numbers = #tpu.dot_dimension_numbers<[1], [0], [0], [1], [0, 0, 1, 1], [], []>} : vector<8x36xf32>, vector<36x1xf32>, vector<8x1xf32> -> vector<8x1xf32>
    %c0_8 = arith.constant 0 : index
    %c0_9 = arith.constant 0 : index
    %8 = vector.load %arg5[%c0_8, %c0_9] : memref<2x8xf32, #tpu.memory_space<vmem>>, vector<2x8xf32>
    %cst_10 = arith.constant dense<0.000000e+00> : vector<2x1xf32>
    %9 = tpu.matmul %8, %7, %cst_10 {dimension_numbers = #tpu.dot_dimension_numbers<[1], [0], [0], [1], [0, 0, 1, 1], [], []>} : vector<2x8xf32>, vector<8x1xf32>, vector<2x1xf32> -> vector<2x1xf32>
    %c0_11 = arith.constant 0 : index
    %c0_12 = arith.constant 0 : index
    %10 = vector.load %arg6[%c0_11, %c0_12] : memref<2x1xf32, #tpu.memory_space<vmem>>, vector<2x1xf32>
    %11 = arith.addf %9, %10 : vector<2x1xf32>
    %cst_13 = arith.constant 0.000000e+00 : f32
    %12 = vector.broadcast %cst_13 : f32 to vector<2x1xf32>
    %13 = arith.maximumf %11, %12 : vector<2x1xf32>
    %c0_14 = arith.constant 0 : index
    %c0_15 = arith.constant 0 : index
    %14 = vector.load %arg7[%c0_14, %c0_15] : memref<8x2xf32, #tpu.memory_space<vmem>>, vector<8x2xf32>
    %cst_16 = arith.constant dense<0.000000e+00> : vector<8x1xf32>
    %15 = tpu.matmul %14, %13, %cst_16 {dimension_numbers = #tpu.dot_dimension_numbers<[1], [0], [0], [1], [0, 0, 1, 1], [], []>} : vector<8x2xf32>, vector<2x1xf32>, vector<8x1xf32> -> vector<8x1xf32>
    %c0_17 = arith.constant 0 : index
    %c0_18 = arith.constant 0 : index
    %16 = vector.load %arg8[%c0_17, %c0_18] : memref<8x1xf32, #tpu.memory_space<vmem>>, vector<8x1xf32>
    %17 = arith.addf %15, %16 : vector<8x1xf32>
    %cst_19 = arith.constant 3.000000e+00 : f32
    %18 = vector.broadcast %cst_19 : f32 to vector<8x1xf32>
    %19 = arith.addf %17, %18 : vector<8x1xf32>
    %cst_20 = arith.constant 0.166666672 : f32
    %20 = vector.broadcast %cst_20 : f32 to vector<8x1xf32>
    %21 = arith.mulf %19, %20 : vector<8x1xf32>
    %cst_21 = arith.constant 0.000000e+00 : f32
    %cst_22 = arith.constant 1.000000e+00 : f32
    %22 = vector.broadcast %cst_21 : f32 to vector<8x1xf32>
    %23 = arith.maximumf %22, %21 : vector<8x1xf32>
    %24 = vector.broadcast %cst_22 : f32 to vector<8x1xf32>
    %25 = arith.minimumf %24, %23 : vector<8x1xf32>
    %cst_23 = arith.constant 1.000000e+00 : f32
    %26 = vector.broadcast %cst_23 : f32 to vector<8x1xf32>
    %27 = arith.addf %25, %26 : vector<8x1xf32>
    %28 = vector.broadcast %27 : vector<8x1xf32> to vector<8x256xf32>
    %29 = arith.mulf %3, %28 : vector<8x256xf32>
    %c0_24 = arith.constant 0 : index
    %c0_25 = arith.constant 0 : index
    %c0_26 = arith.constant 0 : index
    %30 = vector.load %arg9[%c0_24, %c0_25, %c0_26] : memref<1x8x256xf32, #tpu.memory_space<vmem>>, vector<1x8x256xf32>
    %31 = vector.shape_cast %30 : vector<1x8x256xf32> to vector<8x256xf32>
    %32 = vector.shape_cast %29 : vector<8x256xf32> to vector<1x8x256xf32>
    tpu.vector_store %arg9[%c0_24, %c0_25, %c0_26], %32 {strides = array<i32>} : memref<1x8x256xf32, #tpu.memory_space<vmem>>, vector<1x8x256xf32>,
    return
  }
  func.func @transform_0(%arg0: i32, %arg1: i32) -> (i32, i32, i32) {
    %c0_i32 = arith.constant 0 : i32
    %c0_i32_0 = arith.constant 0 : i32
    return %arg0, %c0_i32, %arg1 : i32, i32, i32
  }
  func.func @transform_1(%arg0: i32, %arg1: i32) -> (i32, i32, i32) {
    %c0_i32 = arith.constant 0 : i32
    %c0_i32_0 = arith.constant 0 : i32
    %c0_i32_1 = arith.constant 0 : i32
    return %arg0, %c0_i32, %c0_i32_0 : i32, i32, i32
  }
  func.func @transform_2(%arg0: i32, %arg1: i32) -> (i32, i32) {
    %c0_i32 = arith.constant 0 : i32
    %c0_i32_0 = arith.constant 0 : i32
    %c0_i32_1 = arith.constant 0 : i32
    return %c0_i32, %c0_i32_0 : i32, i32
  }
  func.func @transform_3(%arg0: i32, %arg1: i32) -> (i32, i32) {
    %c0_i32 = arith.constant 0 : i32
    %c0_i32_0 = arith.constant 0 : i32
    %c0_i32_1 = arith.constant 0 : i32
    return %c0_i32, %c0_i32_0 : i32, i32
  }
  func.func @transform_4(%arg0: i32, %arg1: i32) -> (i32, i32) {
    %c0_i32 = arith.constant 0 : i32
    %c0_i32_0 = arith.constant 0 : i32
    %c0_i32_1 = arith.constant 0 : i32
    return %c0_i32, %c0_i32_0 : i32, i32
  }
  func.func @transform_5(%arg0: i32, %arg1: i32) -> (i32, i32) {
    %c0_i32 = arith.constant 0 : i32
    %c0_i32_0 = arith.constant 0 : i32
    %c0_i32_1 = arith.constant 0 : i32
    return %c0_i32, %c0_i32_0 : i32, i32
  }
  func.func @transform_6(%arg0: i32, %arg1: i32) -> (i32, i32) {
    %c0_i32 = arith.constant 0 : i32
    %c0_i32_0 = arith.constant 0 : i32
    %c0_i32_1 = arith.constant 0 : i32
    return %c0_i32, %c0_i32_0 : i32, i32
  }
  func.func @transform_7(%arg0: i32, %arg1: i32) -> (i32, i32, i32) {
    %c0_i32 = arith.constant 0 : i32
    %c0_i32_0 = arith.constant 0 : i32
    return %arg0, %c0_i32, %arg1 : i32, i32, i32
  }
}

</mosaic_0001>

<llo_original>
// kernel: tpu_custom_call.1
$region0: #{tpu_custom_call.1}
  #allocation0 [shape = 'u32[]', space=smem, size = 0x4, offset = 0x4, fixed_abs, tag = 'smem constant byte address 0x4 - core index']
  #allocation1 [shape = 'u32[144,128]{1,0:T(1,128)}', space=vmem, size = 0x12000, scoped, tag = 'internal scratch']
  %s0 = inlined_call_operand.vmem [shape: bf16[2,36,256], index: 0, kind: input, shape index: {}]
  %s1 = inlined_call_operand.vmem [shape: f32[2,36,1], index: 1, kind: input, shape index: {}]
  %s2 = inlined_call_operand.vmem [shape: bf16[8,36], index: 2, kind: input, shape index: {}]
  %s3 = inlined_call_operand.vmem [shape: f32[2,8], index: 3, kind: input, shape index: {}]
  %s4 = inlined_call_operand.vmem [shape: f32[2,1], index: 4, kind: input, shape index: {}]
  %s5 = inlined_call_operand.vmem [shape: f32[8,2], index: 5, kind: input, shape index: {}]
  %s6 = inlined_call_operand.vmem [shape: f32[8,1], index: 6, kind: input, shape index: {}]
  %s7 = inlined_call_operand.hbm [shape: f32[2,8,256], index: 7, kind: output, shape index: {}]
  %s8 = sld [smem:[#allocation0]]
  $region61: #{tpu_custom_call.1} parent=0
    _
  %s10 = ssub.s32 1, %s8
  %s11 = scalar_select 0, %s10, %s8
  $region1: #{tpu_custom_call.1} parent=0
    #allocation2 [shape = 'u8[16384]{0}', space=vmem, size = 0x4000, scoped, tag = 'output window, operand 0']
    #allocation3 [shape = 's32[2]{0}', space=sflag, size = 0x8, scoped, tag = 'scoped memory for tpu_custom_call.1']
    %12 = vsyncpa [#allocation3], 0
    %s13 = scalar_lea.sflag [#allocation3], 1
    %14 = vsyncpa %s13, 0
    loop: start=0, step=1, limit=4
    $region2: #{tpu_custom_call.1} parent=1 // loop_pre_header
      _
    $region3: #{tpu_custom_call.1} parent=1 // loop_header
      %s16 = sphi 0, %s20
      %p17 = scmp.ge.s32.totalorder %s16, 4
      %s23 = sphi 0, %s35
      %s24 = sphi 0, %s31
      %s25 = sphi 0, %s23
      %s26 = sphi 0, %s24
      %s27 = sphi 0, %s25
      %s28 = sphi 0, %s26
      %s40 = sphi 0, %s42
      %s43 = sphi 0, %s40
      %s44 = sphi 0, %s43
      %s60 = sphi 0, %s44
      %s66 = sphi 0, %s68
      %s69 = sphi 0, %s66
      %s70 = sphi 0, %s69
      %s86 = sphi 0, %s70
      %s90 = sphi 0, %s90
      %s92 = sphi 0, %s90
      %s93 = sphi 0, %s92
      %s107 = sphi 0, %s93
      %s111 = sphi 0, %s111
      %s113 = sphi 0, %s111
      %s114 = sphi 0, %s113
      %s128 = sphi 0, %s114
      %s132 = sphi 0, %s132
      %s134 = sphi 0, %s132
      %s135 = sphi 0, %s134
      %s149 = sphi 0, %s135
      %s153 = sphi 0, %s153
      %s155 = sphi 0, %s153
      %s156 = sphi 0, %s155
      %s170 = sphi 0, %s156
      %s174 = sphi 0, %s174
      %s176 = sphi 0, %s174
      %s177 = sphi 0, %s176
      %s191 = sphi 0, %s177
      %s199 = sphi 0, %s201
      %s202 = sphi 0, %s199
      %s203 = sphi 0, %s202
      %s219 = sphi 0, %s203
    $region4: #{tpu_custom_call.1} parent=1 // loop_header_branch
      %19 = sbr.rel (%p17) target = $region8
    $region5: #{tpu_custom_call.1} parent=1 // loop_body
      %s21 = ssub.s32 %s16, 1
      %s22 = ssub.s32 %s16, 2
      %s29 = sadd.s32 1, %s24
      %p30 = scmp.ge.s32.totalorder %s29, 1
      %s31 = scalar_select %p30, 0, %s29
      %s32 = sadd.s32 1, %s23
      %s33 = scalar_select %p30, %s32, %s23
      %p34 = scmp.ge.s32.totalorder %s33, 2
      %s35 = scalar_select %p34, 0, %s33
      %s36 = ssub.s32 %s23, %s35
      %s37 = ssub.s32 %s24, %s31
      %s38 = sor.u32 %s36, %s37
      %p39 = scmp.eq.s32.totalorder %s38, 0
      %s41 = sadd.s32 %s40, 1
      %s42 = scalar_select %p39, %s40, %s41
      %p45 = pneg %p39
      %p46 = scmp.eq.s32.totalorder %s16, 1
      %p47 = por %p45, %p46
      %p48 = scmp.ne.s32.totalorder %s40, %s43
      %p49 = scmp.eq.s32.totalorder %s16, 0
      %p50 = por %p48, %p49
      %p51 = scmp.ne.s32.totalorder %s40, %s43
      %p52 = scmp.eq.s32.totalorder %s21, 1
      %p53 = por %p51, %p52
      %p54 = scmp.ne.s32.totalorder %s43, %s44
      %p55 = scmp.eq.s32.totalorder %s21, 0
      %p56 = por %p54, %p55
      %p57 = scmp.ne.s32.totalorder %s43, %s44
      %p58 = scmp.eq.s32.totalorder %s22, 1
      %p59 = por %p57, %p58
      %p61 = scmp.ne.s32.totalorder %s44, %s60
      %p62 = scmp.eq.s32.totalorder %s22, 0
      %p63 = por %p61, %p62
      %s64 = ssub.s32 %s23, %s35
      %p65 = scmp.eq.s32.totalorder %s64, 0
      %s67 = sadd.s32 %s66, 1
      %s68 = scalar_select %p65, %s66, %s67
      %p71 = pneg %p65
      %p72 = scmp.eq.s32.totalorder %s16, 1
      %p73 = por %p71, %p72
      %p74 = scmp.ne.s32.totalorder %s66, %s69
      %p75 = scmp.eq.s32.totalorder %s16, 0
      %p76 = por %p74, %p75
      %p77 = scmp.ne.s32.totalorder %s66, %s69
      %p78 = scmp.eq.s32.totalorder %s21, 1
      %p79 = por %p77, %p78
      %p80 = scmp.ne.s32.totalorder %s69, %s70
      %p81 = scmp.eq.s32.totalorder %s21, 0
      %p82 = por %p80, %p81
      %p83 = scmp.ne.s32.totalorder %s69, %s70
      %p84 = scmp.eq.s32.totalorder %s22, 1
      %p85 = por %p83, %p84
      %p87 = scmp.ne.s32.totalorder %s70, %s86
      %p88 = scmp.eq.s32.totalorder %s22, 0
      %p89 = por %p87, %p88
      %s91 = sadd.s32 %s90, 1
      %p94 = scmp.eq.s32.totalorder %s16, 1
      %p95 = scmp.ne.s32.totalorder %s90, %s92
      %p96 = scmp.eq.s32.totalorder %s16, 0
      %p97 = por %p95, %p96
      %p98 = scmp.ne.s32.totalorder %s90, %s92
      %p99 = scmp.eq.s32.totalorder %s21, 1
      %p100 = por %p98, %p99
      %p101 = scmp.ne.s32.totalorder %s92, %s93
      %p102 = scmp.eq.s32.totalorder %s21, 0
      %p103 = por %p101, %p102
      %p104 = scmp.ne.s32.totalorder %s92, %s93
      %p105 = scmp.eq.s32.totalorder %s22, 1
      %p106 = por %p104, %p105
      %p108 = scmp.ne.s32.totalorder %s93, %s107
      %p109 = scmp.eq.s32.totalorder %s22, 0
      %p110 = por %p108, %p109
      %s112 = sadd.s32 %s111, 1
      %p115 = scmp.eq.s32.totalorder %s16, 1
      %p116 = scmp.ne.s32.totalorder %s111, %s113
      %p117 = scmp.eq.s32.totalorder %s16, 0
      %p118 = por %p116, %p117
      %p119 = scmp.ne.s32.totalorder %s111, %s113
      %p120 = scmp.eq.s32.totalorder %s21, 1
      %p121 = por %p119, %p120
      %p122 = scmp.ne.s32.totalorder %s113, %s114
      %p123 = scmp.eq.s32.totalorder %s21, 0
      %p124 = por %p122, %p123
      %p125 = scmp.ne.s32.totalorder %s113, %s114
      %p126 = scmp.eq.s32.totalorder %s22, 1
      %p127 = por %p125, %p126
      %p129 = scmp.ne.s32.totalorder %s114, %s128
      %p130 = scmp.eq.s32.totalorder %s22, 0
      %p131 = por %p129, %p130
      %s133 = sadd.s32 %s132, 1
      %p136 = scmp.eq.s32.totalorder %s16, 1
      %p137 = scmp.ne.s32.totalorder %s132, %s134
      %p138 = scmp.eq.s32.totalorder %s16, 0
      %p139 = por %p137, %p138
      %p140 = scmp.ne.s32.totalorder %s132, %s134
      %p141 = scmp.eq.s32.totalorder %s21, 1
      %p142 = por %p140, %p141
      %p143 = scmp.ne.s32.totalorder %s134, %s135
      %p144 = scmp.eq.s32.totalorder %s21, 0
      %p145 = por %p143, %p144
      %p146 = scmp.ne.s32.totalorder %s134, %s135
      %p147 = scmp.eq.s32.totalorder %s22, 1
      %p148 = por %p146, %p147
      %p150 = scmp.ne.s32.totalorder %s135, %s149
      %p151 = scmp.eq.s32.totalorder %s22, 0
      %p152 = por %p150, %p151
      %s154 = sadd.s32 %s153, 1
      %p157 = scmp.eq.s32.totalorder %s16, 1
      %p158 = scmp.ne.s32.totalorder %s153, %s155
      %p159 = scmp.eq.s32.totalorder %s16, 0
      %p160 = por %p158, %p159
      %p161 = scmp.ne.s32.totalorder %s153, %s155
      %p162 = scmp.eq.s32.totalorder %s21, 1
      %p163 = por %p161, %p162
      %p164 = scmp.ne.s32.totalorder %s155, %s156
      %p165 = scmp.eq.s32.totalorder %s21, 0
      %p166 = por %p164, %p165
      %p167 = scmp.ne.s32.totalorder %s155, %s156
      %p168 = scmp.eq.s32.totalorder %s22, 1
      %p169 = por %p167, %p168
      %p171 = scmp.ne.s32.totalorder %s156, %s170
      %p172 = scmp.eq.s32.totalorder %s22, 0
      %p173 = por %p171, %p172
      %s175 = sadd.s32 %s174, 1
      %p178 = scmp.eq.s32.totalorder %s16, 1
      %p179 = scmp.ne.s32.totalorder %s174, %s176
      %p180 = scmp.eq.s32.totalorder %s16, 0
      %p181 = por %p179, %p180
      %p182 = scmp.ne.s32.totalorder %s174, %s176
      %p183 = scmp.eq.s32.totalorder %s21, 1
      %p184 = por %p182, %p183
      %p185 = scmp.ne.s32.totalorder %s176, %s177
      %p186 = scmp.eq.s32.totalorder %s21, 0
      %p187 = por %p185, %p186
      %p188 = scmp.ne.s32.totalorder %s176, %s177
      %p189 = scmp.eq.s32.totalorder %s22, 1
      %p190 = por %p188, %p189
      %p192 = scmp.ne.s32.totalorder %s177, %s191
      %p193 = scmp.eq.s32.totalorder %s22, 0
      %p194 = por %p192, %p193
      %s195 = ssub.s32 %s23, %s35
      %s196 = ssub.s32 %s24, %s31
      %s197 = sor.u32 %s195, %s196
      %p198 = scmp.eq.s32.totalorder %s197, 0
      %s200 = sadd.s32 %s199, 1
      %s201 = scalar_select %p198, %s199, %s200
      %p204 = pneg %p198
      %p205 = scmp.eq.s32.totalorder %s16, 1
      %p206 = por %p204, %p205
      %p207 = scmp.ne.s32.totalorder %s199, %s202
      %p208 = scmp.eq.s32.totalorder %s16, 0
      %p209 = por %p207, %p208
      %p210 = scmp.ne.s32.totalorder %s199, %s202
      %p211 = scmp.eq.s32.totalorder %s21, 1
      %p212 = por %p210, %p211
      %p213 = scmp.ne.s32.totalorder %s202, %s203
      %p214 = scmp.eq.s32.totalorder %s21, 0
      %p215 = por %p213, %p214
      %p216 = scmp.ne.s32.totalorder %s202, %s203
      %p217 = scmp.eq.s32.totalorder %s22, 1
      %p218 = por %p216, %p217
      %p220 = scmp.ne.s32.totalorder %s203, %s219
      %p221 = scmp.eq.s32.totalorder %s22, 0
      %p222 = por %p220, %p221
      %p223 = scmp.le.s32.totalorder 1, %s16
      %p224 = scmp.lt.s32.totalorder %s16, 3
      %p225 = pnand %p223, %p224
      %p226 = pneg %p225
      // Predicated region
      $region9: #{tpu_custom_call.1} parent=5 // pred_check
        _
      $region10: #{tpu_custom_call.1} parent=5 // pred_check_branch
        %228 = sbr.rel (%p225) target = $region12
      $region11: #{tpu_custom_call.1} parent=5 // pred_region
        %s229 = ssub.s32 %s16, 1
        // Predicated region
        $region13: #{tpu_custom_call.1} parent=11 // pred_check
          %p230 = pneg %p103
        $region14: #{tpu_custom_call.1} parent=11 // pred_check_branch
          %232 = sbr.rel (%p230) target = $region16
        $region15: #{tpu_custom_call.1} parent=11 // pred_region
          _
        $region16: #{tpu_custom_call.1} parent=11 // pred_fallthru
          _
        // Predicated region
        $region17: #{tpu_custom_call.1} parent=11 // pred_check
          %p233 = pneg %p124
        $region18: #{tpu_custom_call.1} parent=11 // pred_check_branch
          %235 = sbr.rel (%p233) target = $region20
        $region19: #{tpu_custom_call.1} parent=11 // pred_region
          _
        $region20: #{tpu_custom_call.1} parent=11 // pred_fallthru
          _
        // Predicated region
        $region21: #{tpu_custom_call.1} parent=11 // pred_check
          %p236 = pneg %p145
        $region22: #{tpu_custom_call.1} parent=11 // pred_check_branch
          %238 = sbr.rel (%p236) target = $region24
        $region23: #{tpu_custom_call.1} parent=11 // pred_region
          _
        $region24: #{tpu_custom_call.1} parent=11 // pred_fallthru
          _
        // Predicated region
        $region25: #{tpu_custom_call.1} parent=11 // pred_check
          %p239 = pneg %p166
        $region26: #{tpu_custom_call.1} parent=11 // pred_check_branch
          %241 = sbr.rel (%p239) target = $region28
        $region27: #{tpu_custom_call.1} parent=11 // pred_region
          _
        $region28: #{tpu_custom_call.1} parent=11 // pred_fallthru
          _
        // Predicated region
        $region29: #{tpu_custom_call.1} parent=11 // pred_check
          %p242 = pneg %p187
        $region30: #{tpu_custom_call.1} parent=11 // pred_check_branch
          %244 = sbr.rel (%p242) target = $region32
        $region31: #{tpu_custom_call.1} parent=11 // pred_region
          _
        $region32: #{tpu_custom_call.1} parent=11 // pred_fallthru
          _
      $region12: #{tpu_custom_call.1} parent=5 // pred_fallthru
        _
      %p245 = scmp.lt.s32.totalorder %s16, 2
      // Predicated region
      $region33: #{tpu_custom_call.1} parent=5 // pred_check
        %p246 = pneg %p245
      $region34: #{tpu_custom_call.1} parent=5 // pred_check_branch
        %248 = sbr.rel (%p246) target = $region36
      $region35: #{tpu_custom_call.1} parent=5 // pred_region
        // Predicated region
        $region37: #{tpu_custom_call.1} parent=35 // pred_check
          %p249 = pneg %p50
        $region38: #{tpu_custom_call.1} parent=35 // pred_check_branch
          %251 = sbr.rel (%p249) target = $region40
        $region39: #{tpu_custom_call.1} parent=35 // pred_region
          %s252 = smul.u32 2, %s24
          %p253 = scmp.lt.s32.totalorder %s23, 1
          %s254 = scalar_select %p253, %s23, 1
          %p255 = scmp.lt.s32.totalorder %s252, 1
          %s256 = scalar_select %p255, %s252, 1
          %s257 = smul.addr %s254, 10
          %s258 = sadd.s32 %s256, %s257
          %s259 = smul.addr %s258, 4
          %s260 = scalar_lea.vmem %s0, %s259
          %s261 = smul.u32 2, %s24
        $region40: #{tpu_custom_call.1} parent=35 // pred_fallthru
          _
        // Predicated region
        $region41: #{tpu_custom_call.1} parent=35 // pred_check
          %p262 = pneg %p76
        $region42: #{tpu_custom_call.1} parent=35 // pred_check_branch
          %264 = sbr.rel (%p262) target = $region44
        $region43: #{tpu_custom_call.1} parent=35 // pred_region
          %p265 = scmp.lt.s32.totalorder %s23, 1
          %s266 = scalar_select %p265, %s23, 1
          %s267 = smul.addr %s266, 5
          %s268 = smul.addr %s267, 8
          %s269 = scalar_lea.vmem %s1, %s268
        $region44: #{tpu_custom_call.1} parent=35 // pred_fallthru
          _
      $region36: #{tpu_custom_call.1} parent=5 // pred_fallthru
        _
      %p270 = scmp.le.s32.totalorder 1, %s16
      %p271 = scmp.lt.s32.totalorder %s16, 3
      %p272 = pnand %p270, %p271
      %p273 = pneg %p272
      // Predicated region
      $region45: #{tpu_custom_call.1} parent=5 // pred_check
        _
      $region46: #{tpu_custom_call.1} parent=5 // pred_check_branch
        %275 = sbr.rel (%p272) target = $region48
      $region47: #{tpu_custom_call.1} parent=5 // pred_region
        %s276 = ssub.s32 %s16, 1
        %s277 = smul.u32 2, %s26
        %p278 = scmp.lt.s32.totalorder %s25, 1
        %s279 = scalar_select %p278, %s25, 1
        %p280 = scmp.lt.s32.totalorder %s277, 1
        %s281 = scalar_select %p280, %s277, 1
        %s282 = smul.addr %s279, 10
        %s283 = sadd.s32 %s281, %s282
        %s284 = smul.addr %s283, 4
        %s285 = scalar_lea.vmem %s0, %s284
        %p286 = pneg %p56
        %p287 = pneg %p53
        %p288 = scmp.lt.s32.totalorder %s25, 1
        %s289 = scalar_select %p288, %s25, 1
        %s290 = smul.addr %s289, 5
        %s291 = smul.addr %s290, 8
        %s292 = scalar_lea.vmem %s1, %s291
        %p293 = pneg %p82
        %p294 = pneg %p79
        %p295 = pneg %p103
        %p296 = pneg %p100
        %p297 = pneg %p124
        %p298 = pneg %p121
        %p299 = pneg %p145
        %p300 = pneg %p142
        %p301 = pneg %p166
        %p302 = pneg %p163
        %p303 = pneg %p187
        %p304 = pneg %p184
        %p305 = pneg %p215
        %p306 = pneg %p212
        %s307 = sand.u32 %s202, 1
        %s308 = scalar_lea.sflag [#allocation3], %s307
        %s309 = sand.u32 %s202, 1
        %s310 = smul.addr %s309, 16
        %s311 = scalar_lea.vmem [#allocation2], %s310
        %s312 = smul.u32 2, %s26
        %p313 = scmp.lt.s32.totalorder %s25, 1
        %s314 = scalar_select %p313, %s25, 1
        %p315 = scmp.lt.s32.totalorder %s312, 1
        %s316 = scalar_select %p315, %s312, 1
        %s317 = smul.addr %s314, 10
        %s318 = sadd.s32 %s316, %s317
        %s319 = smul.addr %s318, 4
        %s320 = scalar_lea.vmem %s0, %s319
        %s321 = smul.u32 2, %s26
        %p322 = scmp.lt.s32.totalorder %s25, 1
        %s323 = scalar_select %p322, %s25, 1
        %s324 = smul.addr %s323, 5
        %s325 = smul.addr %s324, 8
        %s326 = scalar_lea.vmem %s1, %s325
        %s327 = smul.u32 2, %s26
        %v329 = vld [vmem:[%s2] sm:$0xf]
        %v330 = vld [vmem:[%s320] sm:$0xff]
        %v331 = vld [vmem:[%s320 + $0x8] sm:$0xff]
        %v332 = vld [vmem:[%s320 + $0x10] sm:$0xff]
        %v333 = vld [vmem:[%s320 + $0x18] sm:$0xff]
        %v334 = vld [vmem:[%s320 + $0x20] sm:$0x33]
        %v340 = vunpack.c.l.b16 %v330
        %v341 = vunpack.c.h.b16 %v330
        %v342 = vunpack.c.l.b16 %v331
        %v343 = vunpack.c.h.b16 %v331
        %v344 = vunpack.c.l.b16 %v332
        %v345 = vunpack.c.h.b16 %v332
        %v346 = vunpack.c.l.b16 %v333
        %v347 = vunpack.c.h.b16 %v333
        %v348 = vunpack.c.l.b16 %v334
        %v349 = vunpack.c.h.b16 %v334
        %v350 = vpack.c.b16 %v342, %v340
        %v351 = vpack.c.b16 %v343, %v341
        %v352 = vpack.c.b16 %v346, %v344
        %v353 = vpack.c.b16 %v347, %v345
        %v354 = vpack.c.b16 %v348, %v348
        %v355 = vpack.c.b16 %v349, %v349
        %vm360 = vcmask 293888
        %v362 = vsel %vm360, %v329, 0
        %vm364 = vcmask 1041408
        %v366 = vsel %vm364, %v354, 0
        %v369 = vsel %vm364, %v355, 0
        %371 = vmatprep.subr.bf16.mxu0 %v351
        %372 = vmatpush1.bf16.msra.mxu0 %v350
        %373 = vmatprep.subr.bf16.mxu0 %v353
        %374 = vmatpush1.bf16.msra.mxu0 %v352
        %375 = vmatprep.subr.bf16.mxu0 %v369
        %376 = vmatpush1.bf16.msra.mxu0 %v366
        %377 = vmatprep.subr.bf16.mxu0 0
        %378 = vmatpush1.bf16.msra.mxu0 0
        %379 = vmatprep.subr.bf16.mxu0 0
        %380 = vmatpush1.bf16.msra.mxu0 0
        %381 = vmatprep.subr.bf16.mxu0 0
        %382 = vmatpush1.bf16.msra.mxu0 0
        %383 = vmatprep.subr.bf16.mxu0 0
        %384 = vmatpush1.bf16.msra.mxu0 0
        %385 = vmatprep.subr.bf16.mxu0 0
        %386 = vmatpush1.bf16.msra.mxu0 0
        %387 = vmatprep.subr.bf16.mxu0 0
        %388 = vmatpush1.bf16.msra.mxu0 0
        %389 = vmatprep.subr.bf16.mxu0 0
        %390 = vmatpush1.bf16.msra.mxu0 0
        %391 = vmatprep.subr.bf16.mxu0 0
        %392 = vmatpush1.bf16.msra.mxu0 0
        %393 = vmatprep.subr.bf16.mxu0 0
        %394 = vmatpush1.bf16.msra.mxu0 0
        %395 = vmatprep.subr.bf16.mxu0 0
        %396 = vmatpush1.bf16.msra.mxu0 0
        %397 = vmatprep.subr.bf16.mxu0 0
        %398 = vmatpush1.bf16.msra.mxu0 0
        %399 = vmatprep.subr.bf16.mxu0 0
        %400 = vmatpush1.bf16.msra.mxu0 0
        %401 = vmatprep.subr.bf16.mxu0 0
        %402 = vmatpush1.bf16.msra.mxu0 0
        %403 = vmatprep.mubr.bf16.mxu0 0
        %404 = vmatmul.mubr.bf16.gmra.mrb[0].mxu0 %v362
        %v405 = vpop.f32.mrb[0].mxu0
        %v406 = vadd.f32 0.0, %v405
        %v407 = vpop.f32.mrb[0].mxu0
        %v408 = vadd.f32 0.0, %v407
        %v409 = vpop.f32.mrb[0].mxu0
        %v410 = vpop.f32.mrb[0].mxu0
        %411 = vdwg.mxu0
        %v412 = vunpack.c.l.bf16 %v329
        %v413 = vld [vmem:[%s326] sm:$0xff]
        %v414 = vld [vmem:[%s326 + $0x8] sm:$0xff]
        %v415 = vld [vmem:[%s326 + $0x10] sm:$0xff]
        %v416 = vld [vmem:[%s326 + $0x18] sm:$0xff]
        %v417 = vld [vmem:[%s326 + $0x20] sm:$0xf]
        %v419 = vsel %vm360, %v412, 0
        %vm421 = vcmask 1043456
        %v423 = vsel %vm421, %v417, 0
        %425 = vmatprep.subr.mxu0 0.0
        %426 = vmatpush1.msra.mxu0 %v413
        %427 = vmatprep.subr.mxu0 0.0
        %428 = vmatpush1.msra.mxu0 %v414
        %429 = vmatprep.subr.mxu0 0.0
        %430 = vmatpush1.msra.mxu0 %v415
        %431 = vmatprep.subr.mxu0 0.0
        %432 = vmatpush1.msra.mxu0 %v416
        %433 = vmatprep.subr.mxu0 0.0
        %434 = vmatpush1.msra.mxu0 %v423
        %435 = vmatprep.subr.mxu0 0.0
        %436 = vmatpush1.msra.mxu0 0.0
        %437 = vmatprep.subr.mxu0 0.0
        %438 = vmatpush1.msra.mxu0 0.0
        %439 = vmatprep.subr.mxu0 0.0
        %440 = vmatpush1.msra.mxu0 0.0
        %441 = vmatprep.subr.mxu0 0.0
        %442 = vmatpush1.msra.mxu0 0.0
        %443 = vmatprep.subr.mxu0 0.0
        %444 = vmatpush1.msra.mxu0 0.0
        %445 = vmatprep.subr.mxu0 0.0
        %446 = vmatpush1.msra.mxu0 0.0
        %447 = vmatprep.subr.mxu0 0.0
        %448 = vmatpush1.msra.mxu0 0.0
        %449 = vmatprep.subr.mxu0 0.0
        %450 = vmatpush1.msra.mxu0 0.0
        %451 = vmatprep.subr.mxu0 0.0
        %452 = vmatpush1.msra.mxu0 0.0
        %453 = vmatprep.subr.mxu0 0.0
        %454 = vmatpush1.msra.mxu0 0.0
        %455 = vmatprep.subr.mxu0 0.0
        %456 = vmatpush1.msra.mxu0 0.0
        %457 = vmatprep.subr.mxu0 0.0
        %458 = vmatpush1.msra.mxu0 0.0
        %459 = vmatprep.subr.mxu0 0.0
        %460 = vmatpush1.msra.mxu0 0.0
        %461 = vmatprep.subr.mxu0 0.0
        %462 = vmatpush1.msra.mxu0 0.0
        %463 = vmatprep.subr.mxu0 0.0
        %464 = vmatpush1.msra.mxu0 0.0
        %465 = vmatprep.subr.mxu0 0.0
        %466 = vmatpush1.msra.mxu0 0.0
        %467 = vmatprep.subr.mxu0 0.0
        %468 = vmatpush1.msra.mxu0 0.0
        %469 = vmatprep.subr.mxu0 0.0
        %470 = vmatpush1.msra.mxu0 0.0
        %471 = vmatprep.subr.mxu0 0.0
        %472 = vmatpush1.msra.mxu0 0.0
        %473 = vmatprep.subr.mxu0 0.0
        %474 = vmatpush1.msra.mxu0 0.0
        %475 = vmatprep.subr.mxu0 0.0
        %476 = vmatpush1.msra.mxu0 0.0
        %477 = vmatprep.subr.mxu0 0.0
        %478 = vmatpush1.msra.mxu0 0.0
        %479 = vmatprep.subr.mxu0 0.0
        %480 = vmatpush1.msra.mxu0 0.0
        %481 = vmatprep.subr.mxu0 0.0
        %482 = vmatpush1.msra.mxu0 0.0
        %483 = vmatprep.subr.mxu0 0.0
        %484 = vmatpush1.msra.mxu0 0.0
        %485 = vmatprep.subr.mxu0 0.0
        %486 = vmatpush1.msra.mxu0 0.0
        %487 = vmatprep.subr.mxu0 0.0
        %488 = vmatpush1.msra.mxu0 0.0
        %489 = vmatprep.mubr.f32.mxu0 0.0
        %490 = vmatmul.mubr.f32.gmra.mrb[0].mxu0 %v419
        %v491 = vpop.f32.mrb[0].mxu0
        %v492 = vadd.f32 0.0, %v491
        %v493 = vpop.f32.mrb[0].mxu0
        %494 = vdwg.mxu0
        %v495 = vld [vmem:[%s3] sm:$0x3]
        %v496 = vld [vmem:[%s4] sm:$0x3]
        %vm497 = vcmask 64512
        %v499 = vsel %vm497, %v495, 0
        %501 = vmatprep.subr.mxu0 0.0
        %502 = vmatpush1.msra.mxu0 %v492
        %503 = vmatprep.subr.mxu0 0.0
        %504 = vmatpush1.msra.mxu0 0.0
        %505 = vmatprep.subr.mxu0 0.0
        %506 = vmatpush1.msra.mxu0 0.0
        %507 = vmatprep.subr.mxu0 0.0
        %508 = vmatpush1.msra.mxu0 0.0
        %509 = vmatprep.subr.mxu0 0.0
        %510 = vmatpush1.msra.mxu0 0.0
        %511 = vmatprep.subr.mxu0 0.0
        %512 = vmatpush1.msra.mxu0 0.0
        %513 = vmatprep.subr.mxu0 0.0
        %514 = vmatpush1.msra.mxu0 0.0
        %515 = vmatprep.subr.mxu0 0.0
        %516 = vmatpush1.msra.mxu0 0.0
        %517 = vmatprep.subr.mxu0 0.0
        %518 = vmatpush1.msra.mxu0 0.0
        %519 = vmatprep.subr.mxu0 0.0
        %520 = vmatpush1.msra.mxu0 0.0
        %521 = vmatprep.subr.mxu0 0.0
        %522 = vmatpush1.msra.mxu0 0.0
        %523 = vmatprep.subr.mxu0 0.0
        %524 = vmatpush1.msra.mxu0 0.0
        %525 = vmatprep.subr.mxu0 0.0
        %526 = vmatpush1.msra.mxu0 0.0
        %527 = vmatprep.subr.mxu0 0.0
        %528 = vmatpush1.msra.mxu0 0.0
        %529 = vmatprep.subr.mxu0 0.0
        %530 = vmatpush1.msra.mxu0 0.0
        %531 = vmatprep.subr.mxu0 0.0
        %532 = vmatpush1.msra.mxu0 0.0
        %533 = vmatprep.subr.mxu0 0.0
        %534 = vmatpush1.msra.mxu0 0.0
        %535 = vmatprep.subr.mxu0 0.0
        %536 = vmatpush1.msra.mxu0 0.0
        %537 = vmatprep.subr.mxu0 0.0
        %538 = vmatpush1.msra.mxu0 0.0
        %539 = vmatprep.subr.mxu0 0.0
        %540 = vmatpush1.msra.mxu0 0.0
        %541 = vmatprep.subr.mxu0 0.0
        %542 = vmatpush1.msra.mxu0 0.0
        %543 = vmatprep.subr.mxu0 0.0
        %544 = vmatpush1.msra.mxu0 0.0
        %545 = vmatprep.subr.mxu0 0.0
        %546 = vmatpush1.msra.mxu0 0.0
        %547 = vmatprep.subr.mxu0 0.0
        %548 = vmatpush1.msra.mxu0 0.0
        %549 = vmatprep.subr.mxu0 0.0
        %550 = vmatpush1.msra.mxu0 0.0
        %551 = vmatprep.subr.mxu0 0.0
        %552 = vmatpush1.msra.mxu0 0.0
        %553 = vmatprep.subr.mxu0 0.0
        %554 = vmatpush1.msra.mxu0 0.0
        %555 = vmatprep.subr.mxu0 0.0
        %556 = vmatpush1.msra.mxu0 0.0
        %557 = vmatprep.subr.mxu0 0.0
        %558 = vmatpush1.msra.mxu0 0.0
        %559 = vmatprep.subr.mxu0 0.0
        %560 = vmatpush1.msra.mxu0 0.0
        %561 = vmatprep.subr.mxu0 0.0
        %562 = vmatpush1.msra.mxu0 0.0
        %563 = vmatprep.subr.mxu0 0.0
        %564 = vmatpush1.msra.mxu0 0.0
        %565 = vmatprep.mubr.f32.mxu0 0.0
        %566 = vmatmul.mubr.f32.gmra.mrb[0].mxu0 %v499
        %v567 = vpop.f32.mrb[0].mxu0
        %v568 = vadd.f32 %v496, %v567
        %v569 = vpop.f32.mrb[0].mxu0
        %570 = vdwg.mxu0
        %v571 = vmax.f32 %v568, 0.0
        %v572 = vld [vmem:[%s5] sm:$0xff]
        %v573 = vld [vmem:[%s6] sm:$0xff]
        %vm574 = vcmask 15360
        %v576 = vsel %vm574, %v572, 0
        %v579 = vsel %vm364, %v571, 0
        %581 = vmatprep.subr.mxu0 0.0
        %582 = vmatpush1.msra.mxu0 %v579
        %583 = vmatprep.subr.mxu0 0.0
        %584 = vmatpush1.msra.mxu0 0.0
        %585 = vmatprep.subr.mxu0 0.0
        %586 = vmatpush1.msra.mxu0 0.0
        %587 = vmatprep.subr.mxu0 0.0
        %588 = vmatpush1.msra.mxu0 0.0
        %589 = vmatprep.subr.mxu0 0.0
        %590 = vmatpush1.msra.mxu0 0.0
        %591 = vmatprep.subr.mxu0 0.0
        %592 = vmatpush1.msra.mxu0 0.0
        %593 = vmatprep.subr.mxu0 0.0
        %594 = vmatpush1.msra.mxu0 0.0
        %595 = vmatprep.subr.mxu0 0.0
        %596 = vmatpush1.msra.mxu0 0.0
        %597 = vmatprep.subr.mxu0 0.0
        %598 = vmatpush1.msra.mxu0 0.0
        %599 = vmatprep.subr.mxu0 0.0
        %600 = vmatpush1.msra.mxu0 0.0
        %601 = vmatprep.subr.mxu0 0.0
        %602 = vmatpush1.msra.mxu0 0.0
        %603 = vmatprep.subr.mxu0 0.0
        %604 = vmatpush1.msra.mxu0 0.0
        %605 = vmatprep.subr.mxu0 0.0
        %606 = vmatpush1.msra.mxu0 0.0
        %607 = vmatprep.subr.mxu0 0.0
        %608 = vmatpush1.msra.mxu0 0.0
        %609 = vmatprep.subr.mxu0 0.0
        %610 = vmatpush1.msra.mxu0 0.0
        %611 = vmatprep.subr.mxu0 0.0
        %612 = vmatpush1.msra.mxu0 0.0
        %613 = vmatprep.subr.mxu0 0.0
        %614 = vmatpush1.msra.mxu0 0.0
        %615 = vmatprep.subr.mxu0 0.0
        %616 = vmatpush1.msra.mxu0 0.0
        %617 = vmatprep.subr.mxu0 0.0
        %618 = vmatpush1.msra.mxu0 0.0
        %619 = vmatprep.subr.mxu0 0.0
        %620 = vmatpush1.msra.mxu0 0.0
        %621 = vmatprep.subr.mxu0 0.0
        %622 = vmatpush1.msra.mxu0 0.0
        %623 = vmatprep.subr.mxu0 0.0
        %624 = vmatpush1.msra.mxu0 0.0
        %625 = vmatprep.subr.mxu0 0.0
        %626 = vmatpush1.msra.mxu0 0.0
        %627 = vmatprep.subr.mxu0 0.0
        %628 = vmatpush1.msra.mxu0 0.0
        %629 = vmatprep.subr.mxu0 0.0
        %630 = vmatpush1.msra.mxu0 0.0
        %631 = vmatprep.subr.mxu0 0.0
        %632 = vmatpush1.msra.mxu0 0.0
        %633 = vmatprep.subr.mxu0 0.0
        %634 = vmatpush1.msra.mxu0 0.0
        %635 = vmatprep.subr.mxu0 0.0
        %636 = vmatpush1.msra.mxu0 0.0
        %637 = vmatprep.subr.mxu0 0.0
        %638 = vmatpush1.msra.mxu0 0.0
        %639 = vmatprep.subr.mxu0 0.0
        %640 = vmatpush1.msra.mxu0 0.0
        %641 = vmatprep.subr.mxu0 0.0
        %642 = vmatpush1.msra.mxu0 0.0
        %643 = vmatprep.subr.mxu0 0.0
        %644 = vmatpush1.msra.mxu0 0.0
        %645 = vmatprep.mubr.f32.mxu0 0.0
        %646 = vmatmul.mubr.f32.gmra.mrb[0].mxu0 %v576
        %v647 = vpop.f32.mrb[0].mxu0
        %v648 = vadd.f32 %v573, %v647
        %v649 = vpop.f32.mrb[0].mxu0
        %650 = vdwg.mxu0
        %v651 = vadd.f32 %v648, 3.0
        %v652 = vmul.f32 %v651, 0.16666667
        %v653 = vmax.f32 %v652, 0.0
        %v654 = vmin.f32 %v653, 1.0
        %v655 = vadd.f32 %v654, 1.0
        %657 = vset.pattern.permute.xlu0 0
        %658 = vperm.xlu0 %657, %v655
        %v659 = vpop.permute.xlu0 %658
        %v661 = vmul.f32 %v406, %v659
        %v662 = vmul.f32 %v408, %v659
        %663 = vst [vmem:[%s311] sm:$0xff] %v661
        %664 = vst [vmem:[%s311 + $0x8] sm:$0xff] %v662
        %s665 = sand.u32 %s202, 1
        %s666 = scalar_lea.sflag [#allocation3], %s665
        %s667 = sand.u32 %s202, 1
        %s668 = smul.addr %s667, 16
        %s669 = scalar_lea.vmem [#allocation2], %s668
        // Predicated region
        $region49: #{tpu_custom_call.1} parent=47 // pred_check
          %p670 = pneg %p212
        $region50: #{tpu_custom_call.1} parent=47 // pred_check_branch
          %672 = sbr.rel (%p670) target = $region52
        $region51: #{tpu_custom_call.1} parent=47 // pred_region
          %s673 = smul.u32 2, %s26
          %s675 = ssub.s32 256, 256
          %676 = vsyncadd %s666, %s675
          %s677 = smul.addr %s25, 2
          %s678 = sadd.s32 %s673, %s677
          %s679 = smul.addr %s678, 128
          %s680 = scalar_lea.hbm %s7, %s679
          %s682 = sshll.u32 %s669, 4
          %s683 = int_to_ptr.vmem [resolvable:$true] %s682
          %685 = dma.vmem_to_hbm [thread:$0]  %s683, 256, %s680, %s666
        $region52: #{tpu_custom_call.1} parent=47 // pred_fallthru
          _
      $region48: #{tpu_custom_call.1} parent=5 // pred_fallthru
        _
      %p686 = scmp.le.s32.totalorder 2, %s16
      // Predicated region
      $region53: #{tpu_custom_call.1} parent=5 // pred_check
        %p687 = pneg %p686
      $region54: #{tpu_custom_call.1} parent=5 // pred_check_branch
        %689 = sbr.rel (%p687) target = $region56
      $region55: #{tpu_custom_call.1} parent=5 // pred_region
        %s690 = ssub.s32 %s16, 2
        // Predicated region
        $region57: #{tpu_custom_call.1} parent=55 // pred_check
          %p691 = pneg %p218
        $region58: #{tpu_custom_call.1} parent=55 // pred_check_branch
          %693 = sbr.rel (%p691) target = $region60
        $region59: #{tpu_custom_call.1} parent=55 // pred_region
          %s694 = sand.u32 %s203, 1
          %s695 = scalar_lea.sflag [#allocation3], %s694
          %s696 = sand.u32 %s203, 1
          %s697 = smul.addr %s696, 16
          %s698 = scalar_lea.vmem [#allocation2], %s697
          %699 = dma.done %s695, 256
        $region60: #{tpu_custom_call.1} parent=55 // pred_fallthru
          _
      $region56: #{tpu_custom_call.1} parent=5 // pred_fallthru
        _
    $region6: #{tpu_custom_call.1} parent=1 // loop_footer
      %s20 = sadd.s32 1, %s16
    $region7: #{tpu_custom_call.1} parent=1 // loop_footer_branch
      %15 = sbr.rel target = $region3
    $region8: #{tpu_custom_call.1} parent=1 // loop_exit
      _
    %700 = vsyncpa [#allocation3], 1
    %s701 = scalar_lea.sflag [#allocation3], 1
    %702 = vsyncpa %s701, 1

</llo_original>
